<compile_context>
chip_gen: v5e
topology: v5e:2x2
jax: 0.10.0
libtpu: 0.0.40
codegen_flags: <defaults>
</compile_context>

<pallas_src>
import functools

import jax
import jax.numpy as jnp
from jax.experimental import pallas as pl
from jax.experimental.pallas import tpu as pltpu


_LANE = 128
_MAX_PIX_TILE = 2048  # lane-dense pixel tile; ~(Cin+Ct)*8KiB of VMEM per block


# ---------------- Pallas kernel ----------------

def _kd_pixel_kernel(x_ref, t_ref, o_ref, *, ct, alpha):
    """Per-pixel KD term for one (batch, pixel-tile) block.

    x_ref: (Cin, T) student logits     (channels on sublanes, pixels on lanes)
    t_ref: (Ct,  T) teacher logits
    o_ref: (1,   T) mean_c( log_softmax(x)[c] * softmax(alpha * t)[c] )
    """
    # narrow(1, 0, Ct): static channel slice inside the kernel (no HBM copy).
    x = x_ref[0:ct, :].astype(jnp.float32)
    t = t_ref[...].astype(jnp.float32) * alpha

    # log_softmax over channels (axis 0).
    x_max = jnp.max(x, axis=0, keepdims=True)
    xs = x - x_max
    lse = jnp.log(jnp.sum(jnp.exp(xs), axis=0, keepdims=True))
    log_p = xs - lse

    # softmax(alpha * targets) over channels; normalization folded into the
    # final per-pixel divide (one division per pixel instead of per element).
    t_max = jnp.max(t, axis=0, keepdims=True)
    te = jnp.exp(t - t_max)
    denom = jnp.sum(te, axis=0, keepdims=True) * float(ct)
    num = jnp.sum(log_p * te, axis=0, keepdims=True)

    o_ref[...] = (num / denom).astype(o_ref.dtype)


# ---------------- pallas_call wrapper ----------------

def _kd_per_pixel_loss(inputs, targets, alpha):
    """Returns loss[n, h, w] = (log_softmax(inputs[:, :Ct]) * softmax(alpha*targets)).mean(axis=1)."""
    n, cin, h, w = inputs.shape
    nt, ct, ht, wt = targets.shape
    assert (n, h, w) == (nt, ht, wt) and ct <= cin
    hw = h * w

    # Free reshapes: merge trailing spatial dims so pixels sit on lanes.
    x = inputs.reshape(n, cin, hw)
    t = targets.reshape(n, ct, hw)

    # Pixel tile: single full-extent block when small (or ragged), otherwise a
    # lane-dense 2048-pixel tile (last partial block is handled by Pallas; each
    # pixel is independent so out-of-bounds lanes never affect valid outputs).
    tile = hw if (hw <= _MAX_PIX_TILE or hw % _LANE != 0) else _MAX_PIX_TILE
    grid = (n, pl.cdiv(hw, tile))

    kernel = functools.partial(_kd_pixel_kernel, ct=ct, alpha=float(alpha))
    out = pl.pallas_call(
        kernel,
        out_shape=jax.ShapeDtypeStruct((n, 1, hw), jnp.float32),
        grid=grid,
        in_specs=[
            pl.BlockSpec((None, cin, tile), lambda b, p: (b, 0, p)),
            pl.BlockSpec((None, ct, tile), lambda b, p: (b, 0, p)),
        ],
        out_specs=pl.BlockSpec((None, 1, tile), lambda b, p: (b, 0, p)),
        compiler_params=pltpu.CompilerParams(
            dimension_semantics=("parallel", "parallel")),
    )(x, t)
    return out.reshape(n, h, w)


# ---------------- KnowledgeDistillationLoss ----------------

class KnowledgeDistillationLoss:
    """JAX/Pallas port of the PyTorch KnowledgeDistillationLoss."""

    def __init__(self, reduction='mean', alpha=-1.0):
        self.reduction = reduction
        self.alpha = alpha

    def __call__(self, inputs, targets, mask=None):
        # Heavy per-pixel term in Pallas (one read of inputs/targets).
        loss = _kd_per_pixel_loss(inputs, targets, self.alpha)  # (N, H, W)
        # Mask + final reduction operate on the tiny (N, H, W) array -> plain jnp.
        if mask is not None:
            loss = loss * mask.astype(loss.dtype)
        if self.reduction == 'mean':
            return -jnp.mean(loss)
        elif self.reduction == 'sum':
            return -jnp.sum(loss)
        else:
            return -loss


# ---------------- pure-JAX reference for verification ----------------

def _kd_reference(inputs, targets, alpha, reduction='mean', mask=None):
    ct = targets.shape[1]
    x = inputs[:, :ct]
    log_p = jax.nn.log_softmax(x, axis=1)
    q = jax.nn.softmax(targets * alpha, axis=1)
    loss = jnp.mean(log_p * q, axis=1)
    if mask is not None:
        loss = loss * mask.astype(loss.dtype)
    if reduction == 'mean':
        return -jnp.mean(loss)
    if reduction == 'sum':
        return -jnp.sum(loss)
    return -loss


if __name__ == "__main__":
    key = jax.random.PRNGKey(0)
    k1, k2, k3 = jax.random.split(key, 3)

    # Student has extra channels to exercise inputs.narrow(1, 0, targets.shape[1]).
    inputs = jax.random.normal(k1, (2, 6, 16, 16), dtype=jnp.float32)
    targets = jax.random.normal(k2, (2, 4, 16, 16), dtype=jnp.float32)
    mask = (jax.random.uniform(k3, (2, 16, 16)) > 0.5).astype(jnp.float32)

    # Default module config: reduction='mean', alpha=-1.0 -> scalar loss.
    kd = KnowledgeDistillationLoss(reduction='mean', alpha=-1.0)
    out = kd(inputs, targets)
    jax.block_until_ready(out)
    ref = _kd_reference(inputs, targets, -1.0, 'mean')
    assert out.shape == ()
    assert bool(jnp.allclose(out, ref, rtol=1e-5, atol=1e-6)), (out, ref)

    # reduction='none' with a mask -> per-pixel (N, H, W) output.
    kd_none = KnowledgeDistillationLoss(reduction='none', alpha=-1.0)
    out_n = kd_none(inputs, targets, mask=mask)
    jax.block_until_ready(out_n)
    ref_n = _kd_reference(inputs, targets, -1.0, 'none', mask)
    assert out_n.shape == (2, 16, 16)
    assert bool(jnp.allclose(out_n, ref_n, rtol=1e-5, atol=1e-6))

    print("KERNEL_OK")
</pallas_src>

<mosaic_0001>
module attributes {stable_mosaic.version = 11 : i64} {
  func.func @_kd_pixel_kernel(%arg0: i32, %arg1: i32, %arg2: memref<1x6x256xf32, #tpu.memory_space<vmem>>, %arg3: memref<1x4x256xf32, #tpu.memory_space<vmem>>, %arg4: memref<1x1x256xf32, #tpu.memory_space<vmem>>) attributes {dimension_semantics = [#tpu.dimension_semantics<parallel>, #tpu.dimension_semantics<parallel>], iteration_bounds = array<i64: 2, 1>, scalar_prefetch = 0 : i64, scratch_operands = 0 : i64, tpu.core_type = #tpu.core_type<tc>, window_params = [{transform_indices = @transform_0, window_bounds = array<i64: 1, 6, 256>}, {transform_indices = @transform_1, window_bounds = array<i64: 1, 4, 256>}, {transform_indices = @transform_2, window_bounds = array<i64: 1, 1, 256>}]} {
    %c0 = arith.constant 0 : index
    %c0_0 = arith.constant 0 : index
    %c0_1 = arith.constant 0 : index
    %0 = vector.load %arg2[%c0, %c0_0, %c0_1] : memref<1x6x256xf32, #tpu.memory_space<vmem>>, vector<1x4x256xf32>
    %1 = vector.shape_cast %0 : vector<1x4x256xf32> to vector<4x256xf32>
    %c0_2 = arith.constant 0 : index
    %c0_3 = arith.constant 0 : index
    %c0_4 = arith.constant 0 : index
    %2 = vector.load %arg3[%c0_2, %c0_3, %c0_4] : memref<1x4x256xf32, #tpu.memory_space<vmem>>, vector<1x4x256xf32>
    %3 = vector.shape_cast %2 : vector<1x4x256xf32> to vector<4x256xf32>
    %cst = arith.constant -1.000000e+00 : f32
    %4 = vector.broadcast %cst : f32 to vector<4x256xf32>
    %5 = arith.mulf %3, %4 : vector<4x256xf32>
    %cst_5 = arith.constant dense<0xFF800000> : vector<256xf32>
    %6 = vector.multi_reduction <maximumf>, %1, %cst_5 [0] : vector<4x256xf32> to vector<256xf32>
    %7 = vector.shape_cast %6 : vector<256xf32> to vector<1x256xf32>
    %8 = vector.broadcast %7 : vector<1x256xf32> to vector<4x256xf32>
    %9 = arith.subf %1, %8 : vector<4x256xf32>
    %10 = math.exp %9 : vector<4x256xf32>
    %cst_6 = arith.constant dense<0.000000e+00> : vector<256xf32>
    %11 = vector.multi_reduction <add>, %10, %cst_6 [0] : vector<4x256xf32> to vector<256xf32>
    %12 = vector.shape_cast %11 : vector<256xf32> to vector<1x256xf32>
    %13 = math.log %12 : vector<1x256xf32>
    %14 = vector.broadcast %13 : vector<1x256xf32> to vector<4x256xf32>
    %15 = arith.subf %9, %14 : vector<4x256xf32>
    %cst_7 = arith.constant dense<0xFF800000> : vector<256xf32>
    %16 = vector.multi_reduction <maximumf>, %5, %cst_7 [0] : vector<4x256xf32> to vector<256xf32>
    %17 = vector.shape_cast %16 : vector<256xf32> to vector<1x256xf32>
    %18 = vector.broadcast %17 : vector<1x256xf32> to vector<4x256xf32>
    %19 = arith.subf %5, %18 : vector<4x256xf32>
    %20 = math.exp %19 : vector<4x256xf32>
    %cst_8 = arith.constant dense<0.000000e+00> : vector<256xf32>
    %21 = vector.multi_reduction <add>, %20, %cst_8 [0] : vector<4x256xf32> to vector<256xf32>
    %22 = vector.shape_cast %21 : vector<256xf32> to vector<1x256xf32>
    %cst_9 = arith.constant 4.000000e+00 : f32
    %23 = vector.broadcast %cst_9 : f32 to vector<1x256xf32>
    %24 = arith.mulf %22, %23 : vector<1x256xf32>
    %25 = arith.mulf %15, %20 : vector<4x256xf32>
    %cst_10 = arith.constant dense<0.000000e+00> : vector<256xf32>
    %26 = vector.multi_reduction <add>, %25, %cst_10 [0] : vector<4x256xf32> to vector<256xf32>
    %27 = vector.shape_cast %26 : vector<256xf32> to vector<1x256xf32>
    %28 = arith.divf %27, %24 : vector<1x256xf32>
    %c0_11 = arith.constant 0 : index
    %c0_12 = arith.constant 0 : index
    %c0_13 = arith.constant 0 : index
    %29 = vector.load %arg4[%c0_11, %c0_12, %c0_13] : memref<1x1x256xf32, #tpu.memory_space<vmem>>, vector<1x1x256xf32>
    %30 = vector.shape_cast %29 : vector<1x1x256xf32> to vector<1x256xf32>
    %31 = vector.shape_cast %28 : vector<1x256xf32> to vector<1x1x256xf32>
    tpu.vector_store %arg4[%c0_11, %c0_12, %c0_13], %31 {strides = array<i32>} : memref<1x1x256xf32, #tpu.memory_space<vmem>>, vector<1x1x256xf32>,
    return
  }
  func.func @transform_0(%arg0: i32, %arg1: i32) -> (i32, i32, i32) {
    %c0_i32 = arith.constant 0 : i32
    %c0_i32_0 = arith.constant 0 : i32
    return %arg0, %c0_i32, %arg1 : i32, i32, i32
  }
  func.func @transform_1(%arg0: i32, %arg1: i32) -> (i32, i32, i32) {
    %c0_i32 = arith.constant 0 : i32
    %c0_i32_0 = arith.constant 0 : i32
    return %arg0, %c0_i32, %arg1 : i32, i32, i32
  }
  func.func @transform_2(%arg0: i32, %arg1: i32) -> (i32, i32, i32) {
    %c0_i32 = arith.constant 0 : i32
    %c0_i32_0 = arith.constant 0 : i32
    return %arg0, %c0_i32, %arg1 : i32, i32, i32
  }
}

</mosaic_0001>

<llo_original>
// kernel: tpu_custom_call.1
$region0: #{tpu_custom_call.1}
  #allocation0 [shape = 'u32[]', space=smem, size = 0x4, offset = 0x4, fixed_abs, tag = 'smem constant byte address 0x4 - core index']
  #allocation1 [shape = 'u32[72,128]{1,0:T(1,128)}', space=vmem, size = 0x9000, scoped, tag = 'internal scratch']
  %s0 = inlined_call_operand.vmem [shape: f32[2,6,256], index: 0, kind: input, shape index: {}]
  %s1 = inlined_call_operand.vmem [shape: f32[2,4,256], index: 1, kind: input, shape index: {}]
  %s2 = inlined_call_operand.hbm [shape: f32[2,1,256], index: 2, kind: output, shape index: {}]
  %s3 = sld [smem:[#allocation0]]
  $region41: #{tpu_custom_call.1} parent=0
    _
  %s5 = ssub.s32 1, %s3
  %s6 = scalar_select 0, %s5, %s3
  $region1: #{tpu_custom_call.1} parent=0
    #allocation2 [shape = 'u8[2048]{0}', space=vmem, size = 0x800, scoped, tag = 'output window, operand 0']
    #allocation3 [shape = 's32[2]{0}', space=sflag, size = 0x8, scoped, tag = 'scoped memory for tpu_custom_call.1']
    %7 = vsyncpa [#allocation3], 0
    %s8 = scalar_lea.sflag [#allocation3], 1
    %9 = vsyncpa %s8, 0
    loop: start=0, step=1, limit=4
    $region2: #{tpu_custom_call.1} parent=1 // loop_pre_header
      _
    $region3: #{tpu_custom_call.1} parent=1 // loop_header
      %s11 = sphi 0, %s15
      %p12 = scmp.ge.s32.totalorder %s11, 4
      %s18 = sphi 0, %s30
      %s19 = sphi 0, %s26
      %s20 = sphi 0, %s18
      %s21 = sphi 0, %s19
      %s22 = sphi 0, %s20
      %s23 = sphi 0, %s21
      %s35 = sphi 0, %s37
      %s38 = sphi 0, %s35
      %s39 = sphi 0, %s38
      %s55 = sphi 0, %s39
      %s63 = sphi 0, %s65
      %s66 = sphi 0, %s63
      %s67 = sphi 0, %s66
      %s83 = sphi 0, %s67
      %s91 = sphi 0, %s93
      %s94 = sphi 0, %s91
      %s95 = sphi 0, %s94
      %s111 = sphi 0, %s95
    $region4: #{tpu_custom_call.1} parent=1 // loop_header_branch
      %14 = sbr.rel (%p12) target = $region8
    $region5: #{tpu_custom_call.1} parent=1 // loop_body
      %s16 = ssub.s32 %s11, 1
      %s17 = ssub.s32 %s11, 2
      %s24 = sadd.s32 1, %s19
      %p25 = scmp.ge.s32.totalorder %s24, 1
      %s26 = scalar_select %p25, 0, %s24
      %s27 = sadd.s32 1, %s18
      %s28 = scalar_select %p25, %s27, %s18
      %p29 = scmp.ge.s32.totalorder %s28, 2
      %s30 = scalar_select %p29, 0, %s28
      %s31 = ssub.s32 %s18, %s30
      %s32 = ssub.s32 %s19, %s26
      %s33 = sor.u32 %s31, %s32
      %p34 = scmp.eq.s32.totalorder %s33, 0
      %s36 = sadd.s32 %s35, 1
      %s37 = scalar_select %p34, %s35, %s36
      %p40 = pneg %p34
      %p41 = scmp.eq.s32.totalorder %s11, 1
      %p42 = por %p40, %p41
      %p43 = scmp.ne.s32.totalorder %s35, %s38
      %p44 = scmp.eq.s32.totalorder %s11, 0
      %p45 = por %p43, %p44
      %p46 = scmp.ne.s32.totalorder %s35, %s38
      %p47 = scmp.eq.s32.totalorder %s16, 1
      %p48 = por %p46, %p47
      %p49 = scmp.ne.s32.totalorder %s38, %s39
      %p50 = scmp.eq.s32.totalorder %s16, 0
      %p51 = por %p49, %p50
      %p52 = scmp.ne.s32.totalorder %s38, %s39
      %p53 = scmp.eq.s32.totalorder %s17, 1
      %p54 = por %p52, %p53
      %p56 = scmp.ne.s32.totalorder %s39, %s55
      %p57 = scmp.eq.s32.totalorder %s17, 0
      %p58 = por %p56, %p57
      %s59 = ssub.s32 %s18, %s30
      %s60 = ssub.s32 %s19, %s26
      %s61 = sor.u32 %s59, %s60
      %p62 = scmp.eq.s32.totalorder %s61, 0
      %s64 = sadd.s32 %s63, 1
      %s65 = scalar_select %p62, %s63, %s64
      %p68 = pneg %p62
      %p69 = scmp.eq.s32.totalorder %s11, 1
      %p70 = por %p68, %p69
      %p71 = scmp.ne.s32.totalorder %s63, %s66
      %p72 = scmp.eq.s32.totalorder %s11, 0
      %p73 = por %p71, %p72
      %p74 = scmp.ne.s32.totalorder %s63, %s66
      %p75 = scmp.eq.s32.totalorder %s16, 1
      %p76 = por %p74, %p75
      %p77 = scmp.ne.s32.totalorder %s66, %s67
      %p78 = scmp.eq.s32.totalorder %s16, 0
      %p79 = por %p77, %p78
      %p80 = scmp.ne.s32.totalorder %s66, %s67
      %p81 = scmp.eq.s32.totalorder %s17, 1
      %p82 = por %p80, %p81
      %p84 = scmp.ne.s32.totalorder %s67, %s83
      %p85 = scmp.eq.s32.totalorder %s17, 0
      %p86 = por %p84, %p85
      %s87 = ssub.s32 %s18, %s30
      %s88 = ssub.s32 %s19, %s26
      %s89 = sor.u32 %s87, %s88
      %p90 = scmp.eq.s32.totalorder %s89, 0
      %s92 = sadd.s32 %s91, 1
      %s93 = scalar_select %p90, %s91, %s92
      %p96 = pneg %p90
      %p97 = scmp.eq.s32.totalorder %s11, 1
      %p98 = por %p96, %p97
      %p99 = scmp.ne.s32.totalorder %s91, %s94
      %p100 = scmp.eq.s32.totalorder %s11, 0
      %p101 = por %p99, %p100
      %p102 = scmp.ne.s32.totalorder %s91, %s94
      %p103 = scmp.eq.s32.totalorder %s16, 1
      %p104 = por %p102, %p103
      %p105 = scmp.ne.s32.totalorder %s94, %s95
      %p106 = scmp.eq.s32.totalorder %s16, 0
      %p107 = por %p105, %p106
      %p108 = scmp.ne.s32.totalorder %s94, %s95
      %p109 = scmp.eq.s32.totalorder %s17, 1
      %p110 = por %p108, %p109
      %p112 = scmp.ne.s32.totalorder %s95, %s111
      %p113 = scmp.eq.s32.totalorder %s17, 0
      %p114 = por %p112, %p113
      %p115 = scmp.le.s32.totalorder 1, %s11
      %p116 = scmp.lt.s32.totalorder %s11, 3
      %p117 = pnand %p115, %p116
      %p118 = pneg %p117
      // Predicated region
      $region9: #{tpu_custom_call.1} parent=5 // pred_check
        _
      $region10: #{tpu_custom_call.1} parent=5 // pred_check_branch
        %120 = sbr.rel (%p117) target = $region12
      $region11: #{tpu_custom_call.1} parent=5 // pred_region
        %s121 = ssub.s32 %s11, 1
      $region12: #{tpu_custom_call.1} parent=5 // pred_fallthru
        _
      %p122 = scmp.lt.s32.totalorder %s11, 2
      // Predicated region
      $region13: #{tpu_custom_call.1} parent=5 // pred_check
        %p123 = pneg %p122
      $region14: #{tpu_custom_call.1} parent=5 // pred_check_branch
        %125 = sbr.rel (%p123) target = $region16
      $region15: #{tpu_custom_call.1} parent=5 // pred_region
        // Predicated region
        $region17: #{tpu_custom_call.1} parent=15 // pred_check
          %p126 = pneg %p45
        $region18: #{tpu_custom_call.1} parent=15 // pred_check_branch
          %128 = sbr.rel (%p126) target = $region20
        $region19: #{tpu_custom_call.1} parent=15 // pred_region
          %s129 = smul.u32 2, %s19
          %p130 = scmp.lt.s32.totalorder %s18, 1
          %s131 = scalar_select %p130, %s18, 1
          %p132 = scmp.lt.s32.totalorder %s129, 1
          %s133 = scalar_select %p132, %s129, 1
          %s134 = smul.addr %s131, 2
          %s135 = sadd.s32 %s133, %s134
          %s136 = smul.addr %s135, 8
          %s137 = scalar_lea.vmem %s0, %s136
          %s138 = smul.u32 2, %s19
        $region20: #{tpu_custom_call.1} parent=15 // pred_fallthru
          _
        // Predicated region
        $region21: #{tpu_custom_call.1} parent=15 // pred_check
          %p139 = pneg %p73
        $region22: #{tpu_custom_call.1} parent=15 // pred_check_branch
          %141 = sbr.rel (%p139) target = $region24
        $region23: #{tpu_custom_call.1} parent=15 // pred_region
          %s142 = smul.u32 2, %s19
          %p143 = scmp.lt.s32.totalorder %s18, 1
          %s144 = scalar_select %p143, %s18, 1
          %p145 = scmp.lt.s32.totalorder %s142, 1
          %s146 = scalar_select %p145, %s142, 1
          %s147 = smul.addr %s144, 2
          %s148 = sadd.s32 %s146, %s147
          %s149 = smul.addr %s148, 4
          %s150 = scalar_lea.vmem %s1, %s149
          %s151 = smul.u32 2, %s19
        $region24: #{tpu_custom_call.1} parent=15 // pred_fallthru
          _
      $region16: #{tpu_custom_call.1} parent=5 // pred_fallthru
        _
      %p152 = scmp.le.s32.totalorder 1, %s11
      %p153 = scmp.lt.s32.totalorder %s11, 3
      %p154 = pnand %p152, %p153
      %p155 = pneg %p154
      // Predicated region
      $region25: #{tpu_custom_call.1} parent=5 // pred_check
        _
      $region26: #{tpu_custom_call.1} parent=5 // pred_check_branch
        %157 = sbr.rel (%p154) target = $region28
      $region27: #{tpu_custom_call.1} parent=5 // pred_region
        %s158 = ssub.s32 %s11, 1
        %s159 = smul.u32 2, %s21
        %p160 = scmp.lt.s32.totalorder %s20, 1
        %s161 = scalar_select %p160, %s20, 1
        %p162 = scmp.lt.s32.totalorder %s159, 1
        %s163 = scalar_select %p162, %s159, 1
        %s164 = smul.addr %s161, 2
        %s165 = sadd.s32 %s163, %s164
        %s166 = smul.addr %s165, 8
        %s167 = scalar_lea.vmem %s0, %s166
        %p168 = pneg %p51
        %p169 = pneg %p48
        %s170 = smul.u32 2, %s21
        %p171 = scmp.lt.s32.totalorder %s20, 1
        %s172 = scalar_select %p171, %s20, 1
        %p173 = scmp.lt.s32.totalorder %s170, 1
        %s174 = scalar_select %p173, %s170, 1
        %s175 = smul.addr %s172, 2
        %s176 = sadd.s32 %s174, %s175
        %s177 = smul.addr %s176, 4
        %s178 = scalar_lea.vmem %s1, %s177
        %p179 = pneg %p79
        %p180 = pneg %p76
        %p181 = pneg %p107
        %p182 = pneg %p104
        %s183 = sand.u32 %s94, 1
        %s184 = scalar_lea.sflag [#allocation3], %s183
        %s185 = sand.u32 %s94, 1
        %s186 = smul.addr %s185, 2
        %s187 = scalar_lea.vmem [#allocation2], %s186
        %s188 = smul.u32 2, %s21
        %p189 = scmp.lt.s32.totalorder %s20, 1
        %s190 = scalar_select %p189, %s20, 1
        %p191 = scmp.lt.s32.totalorder %s188, 1
        %s192 = scalar_select %p191, %s188, 1
        %s193 = smul.addr %s190, 2
        %s194 = sadd.s32 %s192, %s193
        %s195 = smul.addr %s194, 8
        %s196 = scalar_lea.vmem %s0, %s195
        %s197 = smul.u32 2, %s21
        %s198 = smul.u32 2, %s21
        %p199 = scmp.lt.s32.totalorder %s20, 1
        %s200 = scalar_select %p199, %s20, 1
        %p201 = scmp.lt.s32.totalorder %s198, 1
        %s202 = scalar_select %p201, %s198, 1
        %s203 = smul.addr %s200, 2
        %s204 = sadd.s32 %s202, %s203
        %s205 = smul.addr %s204, 4
        %s206 = scalar_lea.vmem %s1, %s205
        %s207 = smul.u32 2, %s21
        %s208 = smul.u32 2, %s21
        %v209 = vld [vmem:[%s196] sm:$0xf]
        %v210 = vld [vmem:[%s196 + $0x8] sm:$0xf]
        %v211 = vld [vmem:[%s206] sm:$0xff]
        %v212 = vmul.f32 %v211, -1.0
        %vm213 = vcmask 1043456
        %v214 = vsel %vm213, %v209, -inf
        %v215 = vrot.slane %v214, 4
        %v216 = vmax.f32 %v214, %v215
        %v217 = vrot.slane %v216, 2
        %v218 = vmax.f32 %v216, %v217
        %v219 = vrot.slane %v218, 1
        %v220 = vmax.f32 %v218, %v219
        %v221 = vsel %vm213, %v210, -inf
        %v222 = vrot.slane %v221, 4
        %v223 = vmax.f32 %v221, %v222
        %v224 = vrot.slane %v223, 2
        %v225 = vmax.f32 %v223, %v224
        %v226 = vrot.slane %v225, 1
        %v227 = vmax.f32 %v225, %v226
        %v228 = vsub.f32 %v209, %v220
        %v229 = vsub.f32 %v210, %v227
        %v230 = vmul.f32 %v228, 1.442695
        %v231 = vpow.pop %v230
        %v232 = vmul.f32 %v229, 1.442695
        %v233 = vpow.pop %v232
        %v234 = vsel %vm213, %v231, 0.0
        %v235 = vrot.slane %v234, 4
        %v236 = vadd.f32 %v234, %v235
        %v237 = vrot.slane %v236, 2
        %v238 = vadd.f32 %v236, %v237
        %v239 = vrot.slane %v238, 1
        %v240 = vadd.f32 %v238, %v239
        %v241 = vsel %vm213, %v233, 0.0
        %v242 = vrot.slane %v241, 4
        %v243 = vadd.f32 %v241, %v242
        %v244 = vrot.slane %v243, 2
        %v245 = vadd.f32 %v243, %v244
        %v246 = vrot.slane %v245, 1
        %v247 = vadd.f32 %v245, %v246
        %v248 = vlog2.pop %v240
        %v249 = vmul.f32 %v248, 0.6931472
        %v250 = vlog2.pop %v247
        %v251 = vmul.f32 %v250, 0.6931472
        %v252 = vsub.f32 %v228, %v249
        %v253 = vsub.f32 %v229, %v251
        %255 = vst [vmem:[#allocation1] ss:$2 sm:$0xff] %v212
        %v256 = vld.sshfl [vmem:[#allocation1] sm:$0xff pattern:$0x75316420]
        %v257 = vld.sshfl [vmem:[#allocation1 + $0x8] sm:$0xff pattern:$0x75316420]
        %v260 = vsel %vm213, %v256, -inf
        %v261 = vrot.slane %v260, 4
        %v262 = vmax.f32 %v260, %v261
        %v263 = vrot.slane %v262, 2
        %v264 = vmax.f32 %v262, %v263
        %v265 = vrot.slane %v264, 1
        %v266 = vmax.f32 %v264, %v265
        %v267 = vsel %vm213, %v257, -inf
        %v268 = vrot.slane %v267, 4
        %v269 = vmax.f32 %v267, %v268
        %v270 = vrot.slane %v269, 2
        %v271 = vmax.f32 %v269, %v270
        %v272 = vrot.slane %v271, 1
        %v273 = vmax.f32 %v271, %v272
        %v276 = vrot.slane %v273, 4
        %v277 = vsel %vm213, %v266, %v276
        %v279 = vsub.f32 %v212, %v277
        %v280 = vmul.f32 %v279, 1.442695
        %v281 = vpow.pop %v280
        %283 = vst [vmem:[#allocation1] ss:$2 sm:$0xff] %v281
        %v284 = vld.sshfl [vmem:[#allocation1] sm:$0xff pattern:$0x75316420]
        %v285 = vld.sshfl [vmem:[#allocation1 + $0x8] sm:$0xff pattern:$0x75316420]
        %v288 = vsel %vm213, %v284, 0.0
        %v289 = vrot.slane %v288, 4
        %v290 = vadd.f32 %v288, %v289
        %v291 = vrot.slane %v290, 2
        %v292 = vadd.f32 %v290, %v291
        %v293 = vrot.slane %v292, 1
        %v294 = vadd.f32 %v292, %v293
        %v295 = vsel %vm213, %v285, 0.0
        %v296 = vrot.slane %v295, 4
        %v297 = vadd.f32 %v295, %v296
        %v298 = vrot.slane %v297, 2
        %v299 = vadd.f32 %v297, %v298
        %v300 = vrot.slane %v299, 1
        %v301 = vadd.f32 %v299, %v300
        %v302 = vmul.f32 %v294, 4.0
        %v303 = vmul.f32 %v301, 4.0
        %304 = vst [vmem:[#allocation1] ss:$2 sm:$0xff] %v281
        %v305 = vld.sshfl [vmem:[#allocation1] sm:$0xff pattern:$0x75316420]
        %v306 = vld.sshfl [vmem:[#allocation1 + $0x8] sm:$0xff pattern:$0x75316420]
        %v309 = vmul.f32 %v252, %v305
        %v310 = vmul.f32 %v253, %v306
        %v311 = vsel %vm213, %v309, 0.0
        %v312 = vrot.slane %v311, 4
        %v313 = vadd.f32 %v311, %v312
        %v314 = vrot.slane %v313, 2
        %v315 = vadd.f32 %v313, %v314
        %v316 = vrot.slane %v315, 1
        %v317 = vadd.f32 %v315, %v316
        %v318 = vsel %vm213, %v310, 0.0
        %v319 = vrot.slane %v318, 4
        %v320 = vadd.f32 %v318, %v319
        %v321 = vrot.slane %v320, 2
        %v322 = vadd.f32 %v320, %v321
        %v323 = vrot.slane %v322, 1
        %v324 = vadd.f32 %v322, %v323
        %v325 = vrcp.pop %v302
        %v326 = vmul.f32 %v302, %v325
        %v327 = vsub.f32 1.0, %v326
        %v328 = vmul.f32 %v325, %v327
        %v329 = vadd.f32 %v325, %v328
        %vm330 = vweird.f32 %v302
        %vm331 = vweird.f32 %v325
        %vm332 = vmor %vm330, %vm331
        %v333 = vsel %vm332, %v325, %v329
        %v334 = vand.u32 2147483647, %v302
        %vm335 = vcmp.eq.f32.partialorder %v334, 8.507059e+37
        %v336 = vand.u32 %v302, 2147483648
        %v337 = vor.u32 1.1754944e-38, %v336
        %v338 = vsel %vm335, %v337, %v333
        %v339 = vmul.f32 %v317, %v338
        %v340 = vrcp.pop %v303
        %v341 = vmul.f32 %v303, %v340
        %v342 = vsub.f32 1.0, %v341
        %v343 = vmul.f32 %v340, %v342
        %v344 = vadd.f32 %v340, %v343
        %vm345 = vweird.f32 %v303
        %vm346 = vweird.f32 %v340
        %vm347 = vmor %vm345, %vm346
        %v348 = vsel %vm347, %v340, %v344
        %v349 = vand.u32 2147483647, %v303
        %vm350 = vcmp.eq.f32.partialorder %v349, 8.507059e+37
        %v351 = vand.u32 %v303, 2147483648
        %v352 = vor.u32 1.1754944e-38, %v351
        %v353 = vsel %vm350, %v352, %v348
        %v354 = vmul.f32 %v324, %v353
        %v357 = vrot.slane %v354, 7
        %vm358 = vcmask 1040384
        %v359 = vsel %vm358, %v339, %v357
        %v361 = vlaneseq
        %vm362 = vcmp.ge.s32.totalorder %v361, 0
        %vm363 = vcmp.lt.s32.totalorder %v361, 256
        %vm364 = vmand %vm362, %vm363
        %365 = vst.msk [vmem:[%s187] sm:$0x3] %vm364, %v359
        %s366 = sand.u32 %s94, 1
        %s367 = scalar_lea.sflag [#allocation3], %s366
        %s368 = sand.u32 %s94, 1
        %s369 = smul.addr %s368, 2
        %s370 = scalar_lea.vmem [#allocation2], %s369
        // Predicated region
        $region29: #{tpu_custom_call.1} parent=27 // pred_check
          %p371 = pneg %p104
        $region30: #{tpu_custom_call.1} parent=27 // pred_check_branch
          %373 = sbr.rel (%p371) target = $region32
        $region31: #{tpu_custom_call.1} parent=27 // pred_region
          %s374 = smul.u32 2, %s21
          %376 = vsyncadd %s367, 0
          %s377 = smul.addr %s20, 2
          %s378 = sadd.s32 %s374, %s377
          %s379 = scalar_lea.hbm %s2, %s378
          %s381 = sshll.u32 %s370, 4
          %s382 = int_to_ptr.vmem [resolvable:$true] %s381
          %s383 = sshll.u32 %s379, 4
          %s384 = int_to_ptr.hbm [resolvable:$true] %s383
          %386 = dma.vmem_to_hbm [thread:$0]  %s382, 32, %s384, %s367
        $region32: #{tpu_custom_call.1} parent=27 // pred_fallthru
          _
      $region28: #{tpu_custom_call.1} parent=5 // pred_fallthru
        _
      %p387 = scmp.le.s32.totalorder 2, %s11
      // Predicated region
      $region33: #{tpu_custom_call.1} parent=5 // pred_check
        %p388 = pneg %p387
      $region34: #{tpu_custom_call.1} parent=5 // pred_check_branch
        %390 = sbr.rel (%p388) target = $region36
      $region35: #{tpu_custom_call.1} parent=5 // pred_region
        %s391 = ssub.s32 %s11, 2
        // Predicated region
        $region37: #{tpu_custom_call.1} parent=35 // pred_check
          %p392 = pneg %p110
        $region38: #{tpu_custom_call.1} parent=35 // pred_check_branch
          %394 = sbr.rel (%p392) target = $region40
        $region39: #{tpu_custom_call.1} parent=35 // pred_region
          %s395 = sand.u32 %s95, 1
          %s396 = scalar_lea.sflag [#allocation3], %s395
          %s397 = sand.u32 %s95, 1
          %s398 = smul.addr %s397, 2
          %s399 = scalar_lea.vmem [#allocation2], %s398
          %401 = dma.done %s396, 32
        $region40: #{tpu_custom_call.1} parent=35 // pred_fallthru
          _
      $region36: #{tpu_custom_call.1} parent=5 // pred_fallthru
        _
    $region6: #{tpu_custom_call.1} parent=1 // loop_footer
      %s15 = sadd.s32 1, %s11
    $region7: #{tpu_custom_call.1} parent=1 // loop_footer_branch
      %10 = sbr.rel target = $region3
    $region8: #{tpu_custom_call.1} parent=1 // loop_exit
      _
    %402 = vsyncpa [#allocation3], 1
    %s403 = scalar_lea.sflag [#allocation3], 1
    %404 = vsyncpa %s403, 1

</llo_original>
